<compile_context>
chip_gen: v5e
topology: v5e:2x2
jax: 0.10.0
libtpu: 0.0.40
codegen_flags: <defaults>
</compile_context>

<pallas_src>
import jax
import jax.numpy as jnp
import numpy as np
from jax.experimental import pallas as pl
from jax.experimental.pallas import tpu as pltpu

_IGNORE_INDEX = -100  # F.cross_entropy default ignore_index

_VMEM = pl.BlockSpec(memory_space=pltpu.MemorySpace.VMEM)
_SMEM = pl.BlockSpec(memory_space=pltpu.MemorySpace.SMEM)


# ---------------------------------------------------------------------------
# Segmentation cross-entropy kernel (tiled, pipelined, per-batch partials)
# ---------------------------------------------------------------------------

def _seg_ce_kernel(logits_ref, labels_ref, loss_ref, cnt_ref):
    # logits_ref: (1, C, TN) native dtype   labels_ref: (1, 1, TN) int32
    # loss_ref / cnt_ref: (1, 1, 128) f32 accumulators, resident across N axis
    n = pl.program_id(1)

    @pl.when(n == 0)
    def _init():
        loss_ref[...] = jnp.zeros_like(loss_ref)
        cnt_ref[...] = jnp.zeros_like(cnt_ref)

    logits = logits_ref[0].astype(jnp.float32)        # (C, TN), cast in-kernel
    labels = labels_ref[0]                            # (1, TN) int32
    C, TN = logits.shape

    m = jnp.max(logits, axis=0, keepdims=True)        # (1, TN)
    shifted = logits - m                              # reused for lse & pick
    lse = jnp.log(jnp.sum(jnp.exp(shifted), axis=0, keepdims=True))  # (1, TN)

    cls_iota = jax.lax.broadcasted_iota(jnp.int32, (C, TN), 0)
    picked = jnp.sum(jnp.where(cls_iota == labels, shifted, 0.0),
                     axis=0, keepdims=True)           # (1, TN)

    valid = labels != _IGNORE_INDEX
    per_point = jnp.where(valid, lse - picked, 0.0)   # (1, TN)

    loss_ref[...] += jnp.sum(per_point)
    cnt_ref[...] += jnp.sum(valid.astype(jnp.float32))


def _choose_tile_n(N, max_tile_n):
    """Largest multiple of 128 dividing N that is <= max_tile_n, else whole N."""
    if N % 128 != 0:
        return N
    best = None
    t = 128
    limit = min(N, max(128, max_tile_n))
    while t <= limit:
        if N % t == 0:
            best = t
        t += 128
    return best if best is not None else N


def seg_cross_entropy(seg_logit, seg_label, *, max_tile_n=2048):
    """F.cross_entropy(seg_logit, seg_label); seg_logit stays (B, C, N)."""
    B, C, N = seg_logit.shape
    tn = _choose_tile_n(N, max_tile_n)
    nt = N // tn
    labels = seg_label.astype(jnp.int32).reshape(B, 1, N)

    loss_sums, counts = pl.pallas_call(
        _seg_ce_kernel,
        out_shape=(
            jax.ShapeDtypeStruct((B, 1, 128), jnp.float32),
            jax.ShapeDtypeStruct((B, 1, 128), jnp.float32),
        ),
        grid_spec=pltpu.PrefetchScalarGridSpec(
            num_scalar_prefetch=0,
            grid=(B, nt),
            in_specs=[
                pl.BlockSpec((1, C, tn), lambda b, n: (b, 0, n)),
                pl.BlockSpec((1, 1, tn), lambda b, n: (b, 0, n)),
            ],
            out_specs=(
                pl.BlockSpec((1, 1, 128), lambda b, n: (b, 0, 0)),
                pl.BlockSpec((1, 1, 128), lambda b, n: (b, 0, 0)),
            ),
        ),
        compiler_params=pltpu.CompilerParams(
            dimension_semantics=("parallel", "arbitrary")),
    )(seg_logit, labels)

    total = jnp.sum(loss_sums[:, 0, 0])
    denom = jnp.sum(counts[:, 0, 0])
    return total / denom


# ---------------------------------------------------------------------------
# Fused tiny-kernel: classification CE + transform regularizer (1 launch)
# ---------------------------------------------------------------------------

def _cls_ce_body(logits, labels):
    # logits: (B, K) f32, labels: (B, 1) i32 -> F.cross_entropy mean over B
    B, K = logits.shape
    m = jnp.max(logits, axis=-1, keepdims=True)
    shifted = logits - m
    lse = jnp.log(jnp.sum(jnp.exp(shifted), axis=-1, keepdims=True))  # (B, 1)
    iota = jax.lax.broadcasted_iota(jnp.int32, (B, K), 1)
    picked = jnp.sum(jnp.where(iota == labels, shifted, 0.0),
                     axis=-1, keepdims=True)                          # (B, 1)
    return jnp.mean(lse - picked)


def _reg_body(t, scale):
    # t: (B, K, K) f32; sum_b || t_b^T t_b - I ||_F^2 * scale
    K = t.shape[-1]
    gram = jnp.einsum("bki,bkj->bij", t, t, preferred_element_type=jnp.float32)
    ri = jax.lax.broadcasted_iota(jnp.int32, (K, K), 0)
    ci = jax.lax.broadcasted_iota(jnp.int32, (K, K), 1)
    eye = (ri == ci).astype(jnp.float32)
    diff = gram - eye[None, :, :]
    return jnp.sum(diff * diff) * scale


def _aux_fused_kernel(scale_ref, cls_logit_ref, cls_label_ref, trans_ref, out_ref):
    out_ref[0] = _cls_ce_body(cls_logit_ref[...].astype(jnp.float32),
                              cls_label_ref[...])
    out_ref[1] = _reg_body(trans_ref[...].astype(jnp.float32), scale_ref[0])


def _cls_only_kernel(cls_logit_ref, cls_label_ref, out_ref):
    out_ref[0] = _cls_ce_body(cls_logit_ref[...].astype(jnp.float32),
                              cls_label_ref[...])


def _reg_only_kernel(scale_ref, trans_ref, out_ref):
    out_ref[0] = _reg_body(trans_ref[...].astype(jnp.float32), scale_ref[0])


def cls_and_reg_losses(cls_logit, cls_label, trans_feature, reg_weight):
    B = trans_feature.shape[0]
    scale = jnp.full((1,), 0.5 * reg_weight / B, jnp.float32)  # SMEM scalar
    out = pl.pallas_call(
        _aux_fused_kernel,
        out_shape=jax.ShapeDtypeStruct((2,), jnp.float32),
        in_specs=[_SMEM, _VMEM, _VMEM, _VMEM],
        out_specs=_SMEM,
    )(scale, cls_logit, cls_label.astype(jnp.int32).reshape(-1, 1), trans_feature)
    return out[0], out[1]


def cls_cross_entropy(cls_logit, cls_label):
    out = pl.pallas_call(
        _cls_only_kernel,
        out_shape=jax.ShapeDtypeStruct((1,), jnp.float32),
        in_specs=[_VMEM, _VMEM],
        out_specs=_SMEM,
    )(cls_logit, cls_label.astype(jnp.int32).reshape(-1, 1))
    return out[0]


def trans_reg_loss(trans_feature, reg_weight):
    B = trans_feature.shape[0]
    scale = jnp.full((1,), 0.5 * reg_weight / B, jnp.float32)
    out = pl.pallas_call(
        _reg_only_kernel,
        out_shape=jax.ShapeDtypeStruct((1,), jnp.float32),
        in_specs=[_SMEM, _VMEM],
        out_specs=_SMEM,
    )(scale, trans_feature)
    return out[0]


# ---------------------------------------------------------------------------
# Module
# ---------------------------------------------------------------------------

class PointNetPartSegLoss:
    """JAX/Pallas port of PointNetPartSegLoss.forward (no learnable params)."""

    def __init__(self, reg_weight, cls_loss_weight, seg_loss_weight,
                 seg_tile_n=2048):
        self.reg_weight = reg_weight
        self.cls_loss_weight = cls_loss_weight
        self.seg_loss_weight = seg_loss_weight
        self.seg_tile_n = seg_tile_n
        assert self.seg_loss_weight >= 0.0

    def __call__(self, preds, labels):
        seg_loss = seg_cross_entropy(preds["seg_logit"], labels["seg_label"],
                                     max_tile_n=self.seg_tile_n)
        loss_dict = {"seg_loss": seg_loss * self.seg_loss_weight}
        if self.cls_loss_weight > 0.0 and self.reg_weight > 0.0:
            cls_loss, reg_loss = cls_and_reg_losses(
                preds["cls_logit"], labels["cls_label"],
                preds["trans_feature"], self.reg_weight)
            loss_dict["cls_loss"] = cls_loss
            loss_dict["reg_loss"] = reg_loss
        elif self.cls_loss_weight > 0.0:
            loss_dict["cls_loss"] = cls_cross_entropy(
                preds["cls_logit"], labels["cls_label"])
        elif self.reg_weight > 0.0:
            loss_dict["reg_loss"] = trans_reg_loss(
                preds["trans_feature"], self.reg_weight)
        return loss_dict


# ---------------------------------------------------------------------------
# Pure-JAX reference (verification only)
# ---------------------------------------------------------------------------

def _ref_ce(logits_nc, labels):
    lse = jax.nn.logsumexp(logits_nc, axis=-1)
    picked = jnp.take_along_axis(logits_nc, labels[..., None], axis=-1)[..., 0]
    return jnp.mean(lse - picked)


def _reference(preds, labels, reg_weight, cls_loss_weight, seg_loss_weight):
    seg = _ref_ce(jnp.transpose(preds["seg_logit"], (0, 2, 1)),
                  labels["seg_label"])
    out = {"seg_loss": seg * seg_loss_weight}
    if cls_loss_weight > 0.0:
        out["cls_loss"] = _ref_ce(preds["cls_logit"], labels["cls_label"])
    if reg_weight > 0.0:
        t = preds["trans_feature"]
        B, K, _ = t.shape
        gram = jnp.einsum("bki,bkj->bij", t, t)
        diff = gram - jnp.eye(K, dtype=t.dtype)[None]
        out["reg_loss"] = jnp.sum(diff * diff) * (0.5 * reg_weight / B)
    return out


# ---------------------------------------------------------------------------
# Main
# ---------------------------------------------------------------------------

if __name__ == "__main__":
    key = jax.random.PRNGKey(0)
    B, C_seg, N = 2, 8, 256   # batch, seg classes, num points
    C_cls = 4                 # shape/category classes
    K = 8                     # feature-transform size

    k1, k2, k3, k4, k5 = jax.random.split(key, 5)
    seg_logit = jax.random.normal(k1, (B, C_seg, N), jnp.float32)
    seg_label = jax.random.randint(k2, (B, N), 0, C_seg, jnp.int32)
    cls_logit = jax.random.normal(k3, (B, C_cls), jnp.float32)
    cls_label = jax.random.randint(k4, (B,), 0, C_cls, jnp.int32)
    trans_feature = jax.random.normal(k5, (B, K, K), jnp.float32)

    preds = {
        "seg_logit": seg_logit,
        "cls_logit": cls_logit,
        "trans_feature": trans_feature,
    }
    labels = {"seg_label": seg_label, "cls_label": cls_label}

    # seg_tile_n=128 -> 2 tiles per batch: exercises the tiled accumulation path
    loss_fn = PointNetPartSegLoss(
        reg_weight=0.001, cls_loss_weight=1.0, seg_loss_weight=1.0,
        seg_tile_n=128)
    loss_dict = loss_fn(preds, labels)
    loss_dict = jax.block_until_ready(loss_dict)

    ref = _reference(preds, labels, 0.001, 1.0, 1.0)
    for name in ("seg_loss", "cls_loss", "reg_loss"):
        np.testing.assert_allclose(
            np.asarray(loss_dict[name]), np.asarray(ref[name]),
            rtol=1e-4, atol=1e-5)

    print("KERNEL_OK")
</pallas_src>

<mosaic_0001>
module attributes {stable_mosaic.version = 11 : i64} {
  func.func @_seg_ce_kernel(%arg0: i32, %arg1: i32, %arg2: memref<1x8x128xf32, #tpu.memory_space<vmem>>, %arg3: memref<1x1x128xi32, #tpu.memory_space<vmem>>, %arg4: memref<1x1x128xf32, #tpu.memory_space<vmem>>, %arg5: memref<1x1x128xf32, #tpu.memory_space<vmem>>) attributes {dimension_semantics = [#tpu.dimension_semantics<parallel>, #tpu.dimension_semantics<arbitrary>], iteration_bounds = array<i64: 2, 2>, scalar_prefetch = 0 : i64, scratch_operands = 0 : i64, tpu.core_type = #tpu.core_type<tc>, window_params = [{transform_indices = @transform_0, window_bounds = array<i64: 1, 8, 128>}, {transform_indices = @transform_1, window_bounds = array<i64: 1, 1, 128>}, {transform_indices = @transform_2, window_bounds = array<i64: 1, 1, 128>}, {transform_indices = @transform_3, window_bounds = array<i64: 1, 1, 128>}]} {
    %c0_i32 = arith.constant 0 : i32
    %0 = arith.cmpi eq, %arg1, %c0_i32 : i32
    %1 = arith.extui %0 : i1 to i32
    %c0_i32_0 = arith.constant 0 : i32
    %2 = arith.cmpi ne, %1, %c0_i32_0 : i32
    scf.if %2 {
      %cst_24 = arith.constant 0.000000e+00 : f32
      %45 = vector.broadcast %cst_24 : f32 to vector<1x1x128xf32>
      %c0_25 = arith.constant 0 : index
      %c0_26 = arith.constant 0 : index
      %c0_27 = arith.constant 0 : index
      %46 = vector.load %arg4[%c0_25, %c0_26, %c0_27] : memref<1x1x128xf32, #tpu.memory_space<vmem>>, vector<1x1x128xf32>
      tpu.vector_store %arg4[%c0_25, %c0_26, %c0_27], %45 {strides = array<i32>} : memref<1x1x128xf32, #tpu.memory_space<vmem>>, vector<1x1x128xf32>,
      %cst_28 = arith.constant 0.000000e+00 : f32
      %47 = vector.broadcast %cst_28 : f32 to vector<1x1x128xf32>
      %c0_29 = arith.constant 0 : index
      %c0_30 = arith.constant 0 : index
      %c0_31 = arith.constant 0 : index
      %48 = vector.load %arg5[%c0_29, %c0_30, %c0_31] : memref<1x1x128xf32, #tpu.memory_space<vmem>>, vector<1x1x128xf32>
      tpu.vector_store %arg5[%c0_29, %c0_30, %c0_31], %47 {strides = array<i32>} : memref<1x1x128xf32, #tpu.memory_space<vmem>>, vector<1x1x128xf32>,
    } else {
    }
    %c0 = arith.constant 0 : index
    %c0_1 = arith.constant 0 : index
    %c0_2 = arith.constant 0 : index
    %3 = vector.load %arg2[%c0, %c0_1, %c0_2] : memref<1x8x128xf32, #tpu.memory_space<vmem>>, vector<1x8x128xf32>
    %4 = vector.shape_cast %3 : vector<1x8x128xf32> to vector<8x128xf32>
    %c0_3 = arith.constant 0 : index
    %c0_4 = arith.constant 0 : index
    %c0_5 = arith.constant 0 : index
    %5 = vector.load %arg3[%c0_3, %c0_4, %c0_5] : memref<1x1x128xi32, #tpu.memory_space<vmem>>, vector<1x1x128xi32>
    %6 = vector.shape_cast %5 : vector<1x1x128xi32> to vector<1x128xi32>
    %cst = arith.constant dense<0xFF800000> : vector<128xf32>
    %7 = vector.multi_reduction <maximumf>, %4, %cst [0] : vector<8x128xf32> to vector<128xf32>
    %8 = vector.shape_cast %7 : vector<128xf32> to vector<1x128xf32>
    %9 = vector.broadcast %8 : vector<1x128xf32> to vector<8x128xf32>
    %10 = arith.subf %4, %9 : vector<8x128xf32>
    %11 = math.exp %10 : vector<8x128xf32>
    %cst_6 = arith.constant dense<0.000000e+00> : vector<128xf32>
    %12 = vector.multi_reduction <add>, %11, %cst_6 [0] : vector<8x128xf32> to vector<128xf32>
    %13 = vector.shape_cast %12 : vector<128xf32> to vector<1x128xf32>
    %14 = math.log %13 : vector<1x128xf32>
    %15 = tpu.iota {dimensions = array<i32: 0>} : vector<8x128xi32>
    %16 = vector.broadcast %6 : vector<1x128xi32> to vector<8x128xi32>
    %17 = arith.cmpi eq, %15, %16 : vector<8x128xi32>
    %cst_7 = arith.constant 0.000000e+00 : f32
    %18 = vector.broadcast %cst_7 : f32 to vector<8x128xf32>
    %19 = arith.select %17, %10, %18 : vector<8x128xi1>, vector<8x128xf32>
    %cst_8 = arith.constant dense<0.000000e+00> : vector<128xf32>
    %20 = vector.multi_reduction <add>, %19, %cst_8 [0] : vector<8x128xf32> to vector<128xf32>
    %21 = vector.shape_cast %20 : vector<128xf32> to vector<1x128xf32>
    %c-100_i32 = arith.constant -100 : i32
    %22 = vector.broadcast %c-100_i32 : i32 to vector<1x128xi32>
    %23 = arith.cmpi ne, %6, %22 : vector<1x128xi32>
    %24 = arith.subf %14, %21 : vector<1x128xf32>
    %cst_9 = arith.constant 0.000000e+00 : f32
    %25 = vector.broadcast %cst_9 : f32 to vector<1x128xf32>
    %26 = arith.select %23, %24, %25 : vector<1x128xi1>, vector<1x128xf32>
    %c0_10 = arith.constant 0 : index
    %c0_11 = arith.constant 0 : index
    %c0_12 = arith.constant 0 : index
    %27 = vector.load %arg4[%c0_10, %c0_11, %c0_12] : memref<1x1x128xf32, #tpu.memory_space<vmem>>, vector<1x1x128xf32>
    %28 = vector.shape_cast %26 : vector<1x128xf32> to vector<1x1x128xf32>
    %cst_13 = arith.constant dense<0.000000e+00> : vector<1xf32>
    %29 = vector.multi_reduction <add>, %28, %cst_13 [1, 2] : vector<1x1x128xf32> to vector<1xf32>
    %30 = vector.shape_cast %29 : vector<1xf32> to vector<1x1x1xf32>
    %31 = vector.extract %30[0, 0, 0] : f32 from vector<1x1x1xf32>
    %32 = vector.broadcast %31 : f32 to vector<1x1x128xf32>
    %33 = arith.addf %27, %32 : vector<1x1x128xf32>
    %c0_14 = arith.constant 0 : index
    %c0_15 = arith.constant 0 : index
    %c0_16 = arith.constant 0 : index
    %34 = vector.load %arg4[%c0_14, %c0_15, %c0_16] : memref<1x1x128xf32, #tpu.memory_space<vmem>>, vector<1x1x128xf32>
    tpu.vector_store %arg4[%c0_14, %c0_15, %c0_16], %33 {strides = array<i32>} : memref<1x1x128xf32, #tpu.memory_space<vmem>>, vector<1x1x128xf32>,
    %c0_17 = arith.constant 0 : index
    %c0_18 = arith.constant 0 : index
    %c0_19 = arith.constant 0 : index
    %35 = vector.load %arg5[%c0_17, %c0_18, %c0_19] : memref<1x1x128xf32, #tpu.memory_space<vmem>>, vector<1x1x128xf32>
    %36 = arith.extui %23 : vector<1x128xi1> to vector<1x128xi32>
    %37 = arith.sitofp %36 : vector<1x128xi32> to vector<1x128xf32>
    %38 = vector.shape_cast %37 : vector<1x128xf32> to vector<1x1x128xf32>
    %cst_20 = arith.constant dense<0.000000e+00> : vector<1xf32>
    %39 = vector.multi_reduction <add>, %38, %cst_20 [1, 2] : vector<1x1x128xf32> to vector<1xf32>
    %40 = vector.shape_cast %39 : vector<1xf32> to vector<1x1x1xf32>
    %41 = vector.extract %40[0, 0, 0] : f32 from vector<1x1x1xf32>
    %42 = vector.broadcast %41 : f32 to vector<1x1x128xf32>
    %43 = arith.addf %35, %42 : vector<1x1x128xf32>
    %c0_21 = arith.constant 0 : index
    %c0_22 = arith.constant 0 : index
    %c0_23 = arith.constant 0 : index
    %44 = vector.load %arg5[%c0_21, %c0_22, %c0_23] : memref<1x1x128xf32, #tpu.memory_space<vmem>>, vector<1x1x128xf32>
    tpu.vector_store %arg5[%c0_21, %c0_22, %c0_23], %43 {strides = array<i32>} : memref<1x1x128xf32, #tpu.memory_space<vmem>>, vector<1x1x128xf32>,
    return
  }
  func.func @transform_0(%arg0: i32, %arg1: i32) -> (i32, i32, i32) {
    %c0_i32 = arith.constant 0 : i32
    %c0_i32_0 = arith.constant 0 : i32
    return %arg0, %c0_i32, %arg1 : i32, i32, i32
  }
  func.func @transform_1(%arg0: i32, %arg1: i32) -> (i32, i32, i32) {
    %c0_i32 = arith.constant 0 : i32
    %c0_i32_0 = arith.constant 0 : i32
    return %arg0, %c0_i32, %arg1 : i32, i32, i32
  }
  func.func @transform_2(%arg0: i32, %arg1: i32) -> (i32, i32, i32) {
    %c0_i32 = arith.constant 0 : i32
    %c0_i32_0 = arith.constant 0 : i32
    %c0_i32_1 = arith.constant 0 : i32
    return %arg0, %c0_i32, %c0_i32_0 : i32, i32, i32
  }
  func.func @transform_3(%arg0: i32, %arg1: i32) -> (i32, i32, i32) {
    %c0_i32 = arith.constant 0 : i32
    %c0_i32_0 = arith.constant 0 : i32
    %c0_i32_1 = arith.constant 0 : i32
    return %arg0, %c0_i32, %c0_i32_0 : i32, i32, i32
  }
}

</mosaic_0001>

<llo_original>
// kernel: tpu_custom_call.1
$region0: #{tpu_custom_call.1}
  #allocation0 [shape = 'u32[]', space=smem, size = 0x4, offset = 0x4, fixed_abs, tag = 'smem constant byte address 0x4 - core index']
  #allocation1 [shape = 'u32[72,128]{1,0:T(1,128)}', space=vmem, size = 0x9000, scoped, tag = 'internal scratch']
  %s0 = inlined_call_operand.hbm [shape: f32[2,8,256], index: 0, kind: input, shape index: {}]
  %s1 = inlined_call_operand.hbm [shape: s32[2,1,256], index: 1, kind: input, shape index: {}]
  %s2 = inlined_call_operand.hbm [shape: f32[2,1,128], index: 2, kind: output, shape index: {0}]
  %s3 = inlined_call_operand.hbm [shape: f32[2,1,128], index: 3, kind: output, shape index: {1}]
  %4 = xla_tuple %s2, %s3
  %s5 = sld [smem:[#allocation0]]
  $region61: #{tpu_custom_call.1} parent=0
    _
  %s7 = ssub.s32 1, %s5
  %s8 = scalar_select 0, %s7, %s5
  $region1: #{tpu_custom_call.1} parent=0
    #allocation2 [shape = 'u8[8192]{0}', space=vmem, size = 0x2000, scoped, tag = 'input window, operand 0']
    #allocation3 [shape = 's32[2]{0}', space=sflag, size = 0x8, scoped, tag = 'scoped memory for tpu_custom_call.1']
    #allocation4 [shape = 's32[2]{0}', space=sflag, size = 0x8, scoped, tag = 'scoped memory for tpu_custom_call.1']
    #allocation5 [shape = 'u8[1024]{0}', space=vmem, size = 0x400, scoped, tag = 'input window, operand 1']
    #allocation6 [shape = 's32[2]{0}', space=sflag, size = 0x8, scoped, tag = 'scoped memory for tpu_custom_call.1']
    #allocation7 [shape = 'u8[1024]{0}', space=vmem, size = 0x400, scoped, tag = 'output window, operand 0']
    #allocation8 [shape = 'u8[1024]{0}', space=vmem, size = 0x400, scoped, tag = 'output window, operand 1']
    #allocation9 [shape = 's32[2]{0}', space=sflag, size = 0x8, scoped, tag = 'scoped memory for tpu_custom_call.1']
    %9 = vsyncpa [#allocation3], 0
    %s10 = scalar_lea.sflag [#allocation3], 1
    %11 = vsyncpa %s10, 0
    %12 = vsyncpa [#allocation6], 0
    %s13 = scalar_lea.sflag [#allocation6], 1
    %14 = vsyncpa %s13, 0
    %15 = vsyncpa [#allocation4], 0
    %s16 = scalar_lea.sflag [#allocation4], 1
    %17 = vsyncpa %s16, 0
    %18 = vsyncpa [#allocation9], 0
    %s19 = scalar_lea.sflag [#allocation9], 1
    %20 = vsyncpa %s19, 0
    loop: start=0, step=1, limit=6
    $region2: #{tpu_custom_call.1} parent=1 // loop_pre_header
      _
    $region3: #{tpu_custom_call.1} parent=1 // loop_header
      %s22 = sphi 0, %s26
      %p23 = scmp.ge.s32.totalorder %s22, 6
      %s29 = sphi 0, %s41
      %s30 = sphi 0, %s37
      %s31 = sphi 0, %s29
      %s32 = sphi 0, %s30
      %s33 = sphi 0, %s31
      %s34 = sphi 0, %s32
      %s46 = sphi 0, %s48
      %s49 = sphi 0, %s46
      %s50 = sphi 0, %s49
      %s66 = sphi 0, %s50
      %s74 = sphi 0, %s76
      %s77 = sphi 0, %s74
      %s78 = sphi 0, %s77
      %s94 = sphi 0, %s78
      %s100 = sphi 0, %s102
      %s103 = sphi 0, %s100
      %s104 = sphi 0, %s103
      %s120 = sphi 0, %s104
      %s126 = sphi 0, %s128
      %s129 = sphi 0, %s126
      %s130 = sphi 0, %s129
      %s146 = sphi 0, %s130
    $region4: #{tpu_custom_call.1} parent=1 // loop_header_branch
      %25 = sbr.rel (%p23) target = $region8
    $region5: #{tpu_custom_call.1} parent=1 // loop_body
      %s27 = ssub.s32 %s22, 1
      %s28 = ssub.s32 %s22, 2
      %s35 = sadd.s32 1, %s30
      %p36 = scmp.ge.s32.totalorder %s35, 2
      %s37 = scalar_select %p36, 0, %s35
      %s38 = sadd.s32 1, %s29
      %s39 = scalar_select %p36, %s38, %s29
      %p40 = scmp.ge.s32.totalorder %s39, 2
      %s41 = scalar_select %p40, 0, %s39
      %s42 = ssub.s32 %s29, %s41
      %s43 = ssub.s32 %s30, %s37
      %s44 = sor.u32 %s42, %s43
      %p45 = scmp.eq.s32.totalorder %s44, 0
      %s47 = sadd.s32 %s46, 1
      %s48 = scalar_select %p45, %s46, %s47
      %p51 = pneg %p45
      %p52 = scmp.eq.s32.totalorder %s22, 3
      %p53 = por %p51, %p52
      %p54 = scmp.ne.s32.totalorder %s46, %s49
      %p55 = scmp.eq.s32.totalorder %s22, 0
      %p56 = por %p54, %p55
      %p57 = scmp.ne.s32.totalorder %s46, %s49
      %p58 = scmp.eq.s32.totalorder %s27, 3
      %p59 = por %p57, %p58
      %p60 = scmp.ne.s32.totalorder %s49, %s50
      %p61 = scmp.eq.s32.totalorder %s27, 0
      %p62 = por %p60, %p61
      %p63 = scmp.ne.s32.totalorder %s49, %s50
      %p64 = scmp.eq.s32.totalorder %s28, 3
      %p65 = por %p63, %p64
      %p67 = scmp.ne.s32.totalorder %s50, %s66
      %p68 = scmp.eq.s32.totalorder %s28, 0
      %p69 = por %p67, %p68
      %s70 = ssub.s32 %s29, %s41
      %s71 = ssub.s32 %s30, %s37
      %s72 = sor.u32 %s70, %s71
      %p73 = scmp.eq.s32.totalorder %s72, 0
      %s75 = sadd.s32 %s74, 1
      %s76 = scalar_select %p73, %s74, %s75
      %p79 = pneg %p73
      %p80 = scmp.eq.s32.totalorder %s22, 3
      %p81 = por %p79, %p80
      %p82 = scmp.ne.s32.totalorder %s74, %s77
      %p83 = scmp.eq.s32.totalorder %s22, 0
      %p84 = por %p82, %p83
      %p85 = scmp.ne.s32.totalorder %s74, %s77
      %p86 = scmp.eq.s32.totalorder %s27, 3
      %p87 = por %p85, %p86
      %p88 = scmp.ne.s32.totalorder %s77, %s78
      %p89 = scmp.eq.s32.totalorder %s27, 0
      %p90 = por %p88, %p89
      %p91 = scmp.ne.s32.totalorder %s77, %s78
      %p92 = scmp.eq.s32.totalorder %s28, 3
      %p93 = por %p91, %p92
      %p95 = scmp.ne.s32.totalorder %s78, %s94
      %p96 = scmp.eq.s32.totalorder %s28, 0
      %p97 = por %p95, %p96
      %s98 = ssub.s32 %s29, %s41
      %p99 = scmp.eq.s32.totalorder %s98, 0
      %s101 = sadd.s32 %s100, 1
      %s102 = scalar_select %p99, %s100, %s101
      %p105 = pneg %p99
      %p106 = scmp.eq.s32.totalorder %s22, 3
      %p107 = por %p105, %p106
      %p108 = scmp.ne.s32.totalorder %s100, %s103
      %p109 = scmp.eq.s32.totalorder %s22, 0
      %p110 = por %p108, %p109
      %p111 = scmp.ne.s32.totalorder %s100, %s103
      %p112 = scmp.eq.s32.totalorder %s27, 3
      %p113 = por %p111, %p112
      %p114 = scmp.ne.s32.totalorder %s103, %s104
      %p115 = scmp.eq.s32.totalorder %s27, 0
      %p116 = por %p114, %p115
      %p117 = scmp.ne.s32.totalorder %s103, %s104
      %p118 = scmp.eq.s32.totalorder %s28, 3
      %p119 = por %p117, %p118
      %p121 = scmp.ne.s32.totalorder %s104, %s120
      %p122 = scmp.eq.s32.totalorder %s28, 0
      %p123 = por %p121, %p122
      %s124 = ssub.s32 %s29, %s41
      %p125 = scmp.eq.s32.totalorder %s124, 0
      %s127 = sadd.s32 %s126, 1
      %s128 = scalar_select %p125, %s126, %s127
      %p131 = pneg %p125
      %p132 = scmp.eq.s32.totalorder %s22, 3
      %p133 = por %p131, %p132
      %p134 = scmp.ne.s32.totalorder %s126, %s129
      %p135 = scmp.eq.s32.totalorder %s22, 0
      %p136 = por %p134, %p135
      %p137 = scmp.ne.s32.totalorder %s126, %s129
      %p138 = scmp.eq.s32.totalorder %s27, 3
      %p139 = por %p137, %p138
      %p140 = scmp.ne.s32.totalorder %s129, %s130
      %p141 = scmp.eq.s32.totalorder %s27, 0
      %p142 = por %p140, %p141
      %p143 = scmp.ne.s32.totalorder %s129, %s130
      %p144 = scmp.eq.s32.totalorder %s28, 3
      %p145 = por %p143, %p144
      %p147 = scmp.ne.s32.totalorder %s130, %s146
      %p148 = scmp.eq.s32.totalorder %s28, 0
      %p149 = por %p147, %p148
      %p150 = scmp.le.s32.totalorder 1, %s22
      %p151 = scmp.lt.s32.totalorder %s22, 5
      %p152 = pnand %p150, %p151
      %p153 = pneg %p152
      // Predicated region
      $region9: #{tpu_custom_call.1} parent=5 // pred_check
        _
      $region10: #{tpu_custom_call.1} parent=5 // pred_check_branch
        %155 = sbr.rel (%p152) target = $region12
      $region11: #{tpu_custom_call.1} parent=5 // pred_region
        %s156 = ssub.s32 %s22, 1
      $region12: #{tpu_custom_call.1} parent=5 // pred_fallthru
        _
      %p157 = scmp.lt.s32.totalorder %s22, 4
      // Predicated region
      $region13: #{tpu_custom_call.1} parent=5 // pred_check
        %p158 = pneg %p157
      $region14: #{tpu_custom_call.1} parent=5 // pred_check_branch
        %160 = sbr.rel (%p158) target = $region16
      $region15: #{tpu_custom_call.1} parent=5 // pred_region
        // Predicated region
        $region17: #{tpu_custom_call.1} parent=15 // pred_check
          %p161 = pneg %p56
        $region18: #{tpu_custom_call.1} parent=15 // pred_check_branch
          %163 = sbr.rel (%p161) target = $region20
        $region19: #{tpu_custom_call.1} parent=15 // pred_region
          %s164 = sand.u32 %s46, 1
          %s165 = scalar_lea.sflag [#allocation3], %s164
          %s166 = sand.u32 %s46, 1
          %s167 = smul.addr %s166, 8
          %s168 = scalar_lea.vmem [#allocation2], %s167
          %170 = vsyncadd %s165, 0
          %s171 = smul.addr %s29, 2
          %s172 = sadd.s32 %s30, %s171
          %s173 = smul.addr %s172, 8
          %s174 = scalar_lea.hbm %s0, %s173
          %s176 = sshll.u32 %s174, 4
          %s177 = int_to_ptr.hbm [resolvable:$true] %s176
          %s178 = sshll.u32 %s168, 4
          %s179 = int_to_ptr.vmem [resolvable:$true] %s178
          %181 = dma.hbm_to_vmem [thread:$0]  %s177, 128, %s179, %s165
        $region20: #{tpu_custom_call.1} parent=15 // pred_fallthru
          _
        // Predicated region
        $region21: #{tpu_custom_call.1} parent=15 // pred_check
          %p182 = pneg %p84
        $region22: #{tpu_custom_call.1} parent=15 // pred_check_branch
          %184 = sbr.rel (%p182) target = $region24
        $region23: #{tpu_custom_call.1} parent=15 // pred_region
          %s185 = sand.u32 %s74, 1
          %s186 = scalar_lea.sflag [#allocation6], %s185
          %s187 = sand.u32 %s74, 1
          %s188 = scalar_lea.vmem [#allocation5], %s187
          %190 = vsyncadd %s186, 0
          %s191 = smul.addr %s29, 2
          %s192 = sadd.s32 %s30, %s191
          %s193 = scalar_lea.hbm %s1, %s192
          %s195 = sshll.u32 %s193, 4
          %s196 = int_to_ptr.hbm [resolvable:$true] %s195
          %s197 = sshll.u32 %s188, 4
          %s198 = int_to_ptr.vmem [resolvable:$true] %s197
          %200 = dma.hbm_to_vmem [thread:$0]  %s196, 16, %s198, %s186
        $region24: #{tpu_custom_call.1} parent=15 // pred_fallthru
          _
      $region16: #{tpu_custom_call.1} parent=5 // pred_fallthru
        _
      %p201 = scmp.le.s32.totalorder 1, %s22
      %p202 = scmp.lt.s32.totalorder %s22, 5
      %p203 = pnand %p201, %p202
      %p204 = pneg %p203
      // Predicated region
      $region25: #{tpu_custom_call.1} parent=5 // pred_check
        _
      $region26: #{tpu_custom_call.1} parent=5 // pred_check_branch
        %206 = sbr.rel (%p203) target = $region28
      $region27: #{tpu_custom_call.1} parent=5 // pred_region
        %s207 = ssub.s32 %s22, 1
        %s208 = sand.u32 %s49, 1
        %s209 = scalar_lea.sflag [#allocation3], %s208
        %s210 = sand.u32 %s49, 1
        %s211 = smul.addr %s210, 8
        %s212 = scalar_lea.vmem [#allocation2], %s211
        // Predicated region
        $region29: #{tpu_custom_call.1} parent=27 // pred_check
          %p213 = pneg %p62
        $region30: #{tpu_custom_call.1} parent=27 // pred_check_branch
          %215 = sbr.rel (%p213) target = $region32
        $region31: #{tpu_custom_call.1} parent=27 // pred_region
          %217 = dma.done %s209, 128
        $region32: #{tpu_custom_call.1} parent=27 // pred_fallthru
          _
        %s218 = sand.u32 %s77, 1
        %s219 = scalar_lea.sflag [#allocation6], %s218
        %s220 = sand.u32 %s77, 1
        %s221 = scalar_lea.vmem [#allocation5], %s220
        // Predicated region
        $region33: #{tpu_custom_call.1} parent=27 // pred_check
          %p222 = pneg %p90
        $region34: #{tpu_custom_call.1} parent=27 // pred_check_branch
          %224 = sbr.rel (%p222) target = $region36
        $region35: #{tpu_custom_call.1} parent=27 // pred_region
          %226 = dma.done %s219, 16
        $region36: #{tpu_custom_call.1} parent=27 // pred_fallthru
          _
        %s227 = sand.u32 %s49, 1
        %s228 = scalar_lea.sflag [#allocation3], %s227
        %s229 = sand.u32 %s49, 1
        %s230 = smul.addr %s229, 8
        %s231 = scalar_lea.vmem [#allocation2], %s230
        %p232 = pneg %p62
        %p233 = pneg %p59
        %s234 = sand.u32 %s77, 1
        %s235 = scalar_lea.sflag [#allocation6], %s234
        %s236 = sand.u32 %s77, 1
        %s237 = scalar_lea.vmem [#allocation5], %s236
        %p238 = pneg %p90
        %p239 = pneg %p87
        %p240 = pneg %p116
        %p241 = pneg %p113
        %s242 = sand.u32 %s103, 1
        %s243 = scalar_lea.sflag [#allocation4], %s242
        %s244 = sand.u32 %s103, 1
        %s245 = scalar_lea.vmem [#allocation7], %s244
        %p246 = pneg %p142
        %p247 = pneg %p139
        %s248 = sand.u32 %s129, 1
        %s249 = scalar_lea.sflag [#allocation9], %s248
        %s250 = sand.u32 %s129, 1
        %s251 = scalar_lea.vmem [#allocation8], %s250
        %p252 = scmp.eq.s32.totalorder %s32, 0
        // Predicated region
        $region37: #{tpu_custom_call.1} parent=27 // pred_check
          %p253 = pneg %p252
        $region38: #{tpu_custom_call.1} parent=27 // pred_check_branch
          %255 = sbr.rel (%p253) target = $region40
        $region39: #{tpu_custom_call.1} parent=27 // pred_region
          %256 = vst [vmem:[%s245] sm:$0x1] 0.0
          %257 = vst [vmem:[%s251] sm:$0x1] 0.0
        $region40: #{tpu_custom_call.1} parent=27 // pred_fallthru
          _
        %v258 = vld [vmem:[%s212] sm:$0xff]
        %v259 = vld [vmem:[%s221] sm:$0x1]
        %v260 = vrot.slane %v258, 4
        %v261 = vmax.f32 %v258, %v260
        %v262 = vrot.slane %v261, 2
        %v263 = vmax.f32 %v261, %v262
        %v264 = vrot.slane %v263, 1
        %v265 = vmax.f32 %v263, %v264
        %v266 = vsub.f32 %v258, %v265
        %v267 = vmul.f32 %v266, 1.442695
        %v268 = vpow.pop %v267
        %v269 = vrot.slane %v268, 4
        %v270 = vadd.f32 %v268, %v269
        %v271 = vrot.slane %v270, 2
        %v272 = vadd.f32 %v270, %v271
        %v273 = vrot.slane %v272, 1
        %v274 = vadd.f32 %v272, %v273
        %v275 = vlog2.pop %v274
        %v276 = vmul.f32 %v275, 0.6931472
        %v277 = vlaneseq
        %v278 = vshrl.u32 %v277, 7
        %v279 = vperm.slane %v259, 0
        %vm280 = vcmp.eq.s32.totalorder %v278, %v279
        %v281 = vsel %vm280, %v266, 0.0
        %v282 = vrot.slane %v281, 4
        %v283 = vadd.f32 %v281, %v282
        %v284 = vrot.slane %v283, 2
        %v285 = vadd.f32 %v283, %v284
        %v286 = vrot.slane %v285, 1
        %v287 = vadd.f32 %v285, %v286
        %vm288 = vcmp.ne.s32.totalorder %v259, 4294967196
        %v289 = vsub.f32 %v276, %v287
        %v290 = vsel %vm288, %v289, 0.0
        %v291 = vld [vmem:[%s245] sm:$0x1]
        %vm292 = vcmask 1040384
        %v293 = vsel %vm292, %v290, 0.0
        %294 = vadd.xlane.f32.xlu0 %v293
        %v295 = vpop.xlane.xlu0 %294
        %v296 = vrot.slane %v295, 4
        %v297 = vadd.f32 %v295, %v296
        %v298 = vrot.slane %v297, 2
        %v299 = vadd.f32 %v297, %v298
        %v300 = vrot.slane %v299, 1
        %v301 = vadd.f32 %v299, %v300
        %s302 = vtos %v301
        %v303 = vstv %s302
        %v304 = vadd.f32 %v291, %v303
        %305 = vst [vmem:[%s245] sm:$0x1] %v304
        %v306 = vld [vmem:[%s251] sm:$0x1]
        %v307 = vsel %vm288, 1, 0
        %v308 = vcvt.s32.f32 %v307
        %v309 = vsel %vm292, %v308, 0.0
        %310 = vadd.xlane.f32.xlu0 %v309
        %v311 = vpop.xlane.xlu0 %310
        %v312 = vrot.slane %v311, 4
        %v313 = vadd.f32 %v311, %v312
        %v314 = vrot.slane %v313, 2
        %v315 = vadd.f32 %v313, %v314
        %v316 = vrot.slane %v315, 1
        %v317 = vadd.f32 %v315, %v316
        %s318 = vtos %v317
        %v319 = vstv %s318
        %v320 = vadd.f32 %v306, %v319
        %321 = vst [vmem:[%s251] sm:$0x1] %v320
        %s322 = sand.u32 %s103, 1
        %s323 = scalar_lea.sflag [#allocation4], %s322
        %s324 = sand.u32 %s103, 1
        %s325 = scalar_lea.vmem [#allocation7], %s324
        %s326 = sand.u32 %s129, 1
        %s327 = scalar_lea.sflag [#allocation9], %s326
        %s328 = sand.u32 %s129, 1
        %s329 = scalar_lea.vmem [#allocation8], %s328
        // Predicated region
        $region41: #{tpu_custom_call.1} parent=27 // pred_check
          %p330 = pneg %p113
        $region42: #{tpu_custom_call.1} parent=27 // pred_check_branch
          %332 = sbr.rel (%p330) target = $region44
        $region43: #{tpu_custom_call.1} parent=27 // pred_region
          %334 = vsyncadd %s323, 0
          %s335 = scalar_lea.hbm %s2, %s31
          %s337 = sshll.u32 %s325, 4
          %s338 = int_to_ptr.vmem [resolvable:$true] %s337
          %s339 = sshll.u32 %s335, 4
          %s340 = int_to_ptr.hbm [resolvable:$true] %s339
          %342 = dma.vmem_to_hbm [thread:$0]  %s338, 16, %s340, %s323
        $region44: #{tpu_custom_call.1} parent=27 // pred_fallthru
          _
        // Predicated region
        $region45: #{tpu_custom_call.1} parent=27 // pred_check
          %p343 = pneg %p139
        $region46: #{tpu_custom_call.1} parent=27 // pred_check_branch
          %345 = sbr.rel (%p343) target = $region48
        $region47: #{tpu_custom_call.1} parent=27 // pred_region
          %347 = vsyncadd %s327, 0
          %s348 = scalar_lea.hbm %s3, %s31
          %s350 = sshll.u32 %s329, 4
          %s351 = int_to_ptr.vmem [resolvable:$true] %s350
          %s352 = sshll.u32 %s348, 4
          %s353 = int_to_ptr.hbm [resolvable:$true] %s352
          %355 = dma.vmem_to_hbm [thread:$0]  %s351, 16, %s353, %s327
        $region48: #{tpu_custom_call.1} parent=27 // pred_fallthru
          _
      $region28: #{tpu_custom_call.1} parent=5 // pred_fallthru
        _
      %p356 = scmp.le.s32.totalorder 2, %s22
      // Predicated region
      $region49: #{tpu_custom_call.1} parent=5 // pred_check
        %p357 = pneg %p356
      $region50: #{tpu_custom_call.1} parent=5 // pred_check_branch
        %359 = sbr.rel (%p357) target = $region52
      $region51: #{tpu_custom_call.1} parent=5 // pred_region
        %s360 = ssub.s32 %s22, 2
        // Predicated region
        $region53: #{tpu_custom_call.1} parent=51 // pred_check
          %p361 = pneg %p119
        $region54: #{tpu_custom_call.1} parent=51 // pred_check_branch
          %363 = sbr.rel (%p361) target = $region56
        $region55: #{tpu_custom_call.1} parent=51 // pred_region
          %s364 = sand.u32 %s104, 1
          %s365 = scalar_lea.sflag [#allocation4], %s364
          %s366 = sand.u32 %s104, 1
          %s367 = scalar_lea.vmem [#allocation7], %s366
          %369 = dma.done %s365, 16
        $region56: #{tpu_custom_call.1} parent=51 // pred_fallthru
          _
        // Predicated region
        $region57: #{tpu_custom_call.1} parent=51 // pred_check
          %p370 = pneg %p145
        $region58: #{tpu_custom_call.1} parent=51 // pred_check_branch
          %372 = sbr.rel (%p370) target = $region60
        $region59: #{tpu_custom_call.1} parent=51 // pred_region
          %s373 = sand.u32 %s130, 1
          %s374 = scalar_lea.sflag [#allocation9], %s373
          %s375 = sand.u32 %s130, 1
          %s376 = scalar_lea.vmem [#allocation8], %s375
          %378 = dma.done %s374, 16
        $region60: #{tpu_custom_call.1} parent=51 // pred_fallthru
          _
      $region52: #{tpu_custom_call.1} parent=5 // pred_fallthru
        _
    $region6: #{tpu_custom_call.1} parent=1 // loop_footer
      %s26 = sadd.s32 1, %s22
    $region7: #{tpu_custom_call.1} parent=1 // loop_footer_branch
      %21 = sbr.rel target = $region3
    $region8: #{tpu_custom_call.1} parent=1 // loop_exit
      _
    %379 = vsyncpa [#allocation3], 1
    %s380 = scalar_lea.sflag [#allocation3], 1
    %381 = vsyncpa %s380, 1
    %382 = vsyncpa [#allocation6], 1
    %s383 = scalar_lea.sflag [#allocation6], 1
    %384 = vsyncpa %s383, 1
    %385 = vsyncpa [#allocation4], 1
    %s386 = scalar_lea.sflag [#allocation4], 1
    %387 = vsyncpa %s386, 1
    %388 = vsyncpa [#allocation9], 1
    %s389 = scalar_lea.sflag [#allocation9], 1
    %390 = vsyncpa %s389, 1

</llo_original>
